<compile_context>
chip_gen: v5e
topology: v5e:2x2
jax: 0.10.0
libtpu: 0.0.40
codegen_flags: <defaults>
</compile_context>

<pallas_src>
import jax
import jax.numpy as jnp
from jax.experimental import pallas as pl
from jax.experimental.pallas import tpu as pltpu

LANE = 128
SUBLANE = 16  # bf16 sublane packing: keep batch tiles a multiple of 16.


def _round_up(x, m):
    return ((x + m - 1) // m) * m


def _pad_to(a, shape):
    pads = [(0, s - d) for d, s in zip(a.shape, shape)]
    if all(p == (0, 0) for p in pads):
        return a
    return jnp.pad(a, pads)


def _physical_vmem_bytes():
    """Per-TensorCore physical VMEM; conservative 64 MiB fallback (v7x)."""
    try:
        return int(pltpu.get_tpu_info().vmem_capacity_bytes)
    except Exception:
        return 64 * (1 << 20)


def _tensorcores_per_chip():
    """Best-effort TC count (v7x has 2); used only for the >=2-batch-tile rule."""
    try:
        info = pltpu.get_tpu_info()
        for name in ("num_tensorcores", "tensorcore_count", "num_cores", "core_count"):
            v = getattr(info, name, None)
            if v:
                return int(v)
    except Exception:
        pass
    try:
        kind = jax.devices()[0].device_kind.lower()
    except Exception:
        kind = ""
    return 2 if "v7" in kind else 1


def _vmem_estimate(bt, obs_p, hid_p, out_p, cbytes):
    """Rough per-step VMEM footprint of the streamed-weight pipeline."""
    io = 2 * (bt * obs_p * cbytes + bt * out_p * 4)              # obs/out, 2 buffers
    proj = 2 * (obs_p * hid_p + hid_p * out_p) * cbytes \
        + 2 * (2 * hid_p + out_p) * 4                            # resident in/out proj
    stream = 2 * 2 * (hid_p * hid_p * cbytes + hid_p * 4)        # w1+w2 layer pair, 2 bufs
    scratch = bt * hid_p * 4                                     # f32 activation carry
    return io + proj + stream + scratch


def _select_batch_tile(B, obs_p, hid_p, out_p, cbytes, vmem_cap, n_cores):
    bt = min(512, _round_up(B, SUBLANE))
    # On 2-TC parts make sure the "parallel" batch axis has >= 2 iterations so both
    # TensorCores are used (harmless on 1-TC parts, where we keep the single tile).
    if n_cores >= 2 and _round_up(B, bt) // bt == 1 and B >= 2 * SUBLANE:
        bt = _round_up(-(-B // 2), SUBLANE)
    # Shrink until the footprint comfortably fits the physical VMEM.
    while bt > SUBLANE and _vmem_estimate(bt, obs_p, hid_p, out_p, cbytes) > int(0.8 * vmem_cap):
        bt = max(SUBLANE, _round_up(bt // 2, SUBLANE))
    return bt


def _mlp_expert_kernel(obs_ref, w_in_ref, b_in_ref,
                       w1_ref, b1_ref, w2_ref, b2_ref,
                       w_out_ref, b_out_ref, out_ref, x_ref):
    """One (batch-tile, layer) grid step of the residual MLP.

    Grid = (batch_tiles, L): axis 0 "parallel" (megacore), axis 1 "arbitrary".
    x_ref (VMEM scratch, f32) carries the activation across the layer axis; one
    layer's (hid_p, hid_p) w1/w2 pair is streamed (double-buffered) per step.

    obs_ref   : (BT, obs_p)  bf16
    w_in_ref  : (obs_p, hid_p) bf16    b_in_ref : (1, hid_p)   f32
    w1_ref    : (1, hid_p, hid_p) bf16 b1_ref   : (1, 1, hid_p) f32
    w2_ref    : (1, hid_p, hid_p) bf16 b2_ref   : (1, 1, hid_p) f32
    w_out_ref : (hid_p, out_p) bf16    b_out_ref: (1, out_p)   f32
    out_ref   : (BT, out_p)  f32       x_ref    : (BT, hid_p)  f32
    """
    cdt = w_in_ref.dtype  # MXU operand dtype (bf16); accumulation is always f32.
    l = pl.program_id(1)

    @pl.when(l == 0)
    def _():
        # Input projection for this batch tile.
        x_ref[...] = jnp.dot(obs_ref[...], w_in_ref[...],
                             preferred_element_type=jnp.float32) + b_in_ref[...]

    # Residual block l with the streamed layer weights.
    x = x_ref[...]
    h = jnp.maximum(x, 0.0).astype(cdt)
    h = jnp.dot(h, w1_ref[0], preferred_element_type=jnp.float32) + b1_ref[0]
    h = jnp.maximum(h, 0.0).astype(cdt)
    h = jnp.dot(h, w2_ref[0], preferred_element_type=jnp.float32) + b2_ref[0]
    x = x + h
    x_ref[...] = x

    @pl.when(l == pl.num_programs(1) - 1)
    def _():
        # Output projection; lane-dense (out_p multiple of 128) unmasked store.
        out = jnp.dot(x.astype(cdt), w_out_ref[...],
                      preferred_element_type=jnp.float32) + b_out_ref[...]
        out_ref[...] = out.astype(out_ref.dtype)


def prepare_params(params, *, compute_dtype=jnp.bfloat16):
    """One-time weight padding + bf16 cast (hoisted out of the per-call path).

    Zero padding is exact: padded weight rows/cols and biases are zero, so padded
    lanes stay 0 through the network. If L == 0 the stacks are padded with one
    all-zero block, which is an exact no-op residual block.
    """
    w_in, b_in, w1, b1, w2, b2, w_out, b_out = params
    obs_dim, hidden = w_in.shape
    L = w1.shape[0]
    out_dim = w_out.shape[1]

    obs_p = _round_up(obs_dim, LANE)
    hid_p = _round_up(hidden, LANE)
    out_p = _round_up(out_dim, LANE)
    L_eff = max(L, 1)

    cdt = compute_dtype
    arrays = dict(
        w_in=_pad_to(w_in, (obs_p, hid_p)).astype(cdt),
        b_in=_pad_to(b_in, (1, hid_p)).astype(jnp.float32),
        w1=_pad_to(w1, (L_eff, hid_p, hid_p)).astype(cdt),
        b1=_pad_to(b1, (L_eff, 1, hid_p)).astype(jnp.float32),
        w2=_pad_to(w2, (L_eff, hid_p, hid_p)).astype(cdt),
        b2=_pad_to(b2, (L_eff, 1, hid_p)).astype(jnp.float32),
        w_out=_pad_to(w_out, (hid_p, out_p)).astype(cdt),
        b_out=_pad_to(b_out, (1, out_p)).astype(jnp.float32),
    )
    dims = dict(obs_dim=obs_dim, hidden=hidden, out_dim=out_dim,
                obs_p=obs_p, hid_p=hid_p, out_p=out_p, L=L_eff)
    return arrays, dims


def single_head_mlp_expert_forward(obs, prepared, dims, *, action_dim, n_components,
                                   batch_tile=None):
    """Runs the fused Pallas kernel and returns actions of shape (B, A, C)."""
    B = obs.shape[0]
    obs_p, hid_p, out_p, L = dims["obs_p"], dims["hid_p"], dims["out_p"], dims["L"]
    out_dim = dims["out_dim"]
    assert out_dim == action_dim * n_components

    cdt = prepared["w_in"].dtype
    cbytes = jnp.dtype(cdt).itemsize

    vmem_cap = _physical_vmem_bytes()
    n_cores = _tensorcores_per_chip()
    if batch_tile is None:
        bt = _select_batch_tile(B, obs_p, hid_p, out_p, cbytes, vmem_cap, n_cores)
    else:
        bt = _round_up(min(batch_tile, _round_up(B, SUBLANE)), SUBLANE)
    B_pad = _round_up(B, bt)
    nbt = B_pad // bt

    obs_pad = _pad_to(obs, (B_pad, obs_p)).astype(cdt)

    # Generation-aware scoped-VMEM limit: always set it from the estimate (v5e's
    # default is only 16 MiB) but never above the physical per-TC VMEM (64 MiB v7x).
    est = _vmem_estimate(bt, obs_p, hid_p, out_p, cbytes)
    vmem_limit = min(vmem_cap, max(int(est * 1.5) + (2 << 20), 32 << 20))

    flops = 2 * B_pad * hid_p * (obs_p + 2 * L * hid_p + out_p)
    bytes_accessed = (B_pad * obs_p * cbytes + B_pad * out_p * 4
                      + (obs_p * hid_p + hid_p * out_p) * cbytes
                      + nbt * 2 * L * hid_p * hid_p * cbytes
                      + (2 * hid_p + 2 * L * hid_p + out_p) * 4)

    out_flat = pl.pallas_call(
        _mlp_expert_kernel,
        out_shape=jax.ShapeDtypeStruct((B_pad, out_p), jnp.float32),
        grid=(nbt, L),
        in_specs=[
            pl.BlockSpec((bt, obs_p), lambda i, l: (i, 0)),          # obs (batch tile)
            pl.BlockSpec((obs_p, hid_p), lambda i, l: (0, 0)),       # w_in (resident)
            pl.BlockSpec((1, hid_p), lambda i, l: (0, 0)),           # b_in
            pl.BlockSpec((1, hid_p, hid_p), lambda i, l: (l, 0, 0)),  # w1[l] (streamed)
            pl.BlockSpec((1, 1, hid_p), lambda i, l: (l, 0, 0)),      # b1[l]
            pl.BlockSpec((1, hid_p, hid_p), lambda i, l: (l, 0, 0)),  # w2[l] (streamed)
            pl.BlockSpec((1, 1, hid_p), lambda i, l: (l, 0, 0)),      # b2[l]
            pl.BlockSpec((hid_p, out_p), lambda i, l: (0, 0)),       # w_out (resident)
            pl.BlockSpec((1, out_p), lambda i, l: (0, 0)),           # b_out
        ],
        out_specs=pl.BlockSpec((bt, out_p), lambda i, l: (i, 0)),
        scratch_shapes=[pltpu.VMEM((bt, hid_p), jnp.float32)],       # activation carry
        compiler_params=pltpu.CompilerParams(
            dimension_semantics=("parallel", "arbitrary"),
            vmem_limit_bytes=int(vmem_limit)),
        cost_estimate=pl.CostEstimate(flops=int(flops), transcendentals=0,
                                      bytes_accessed=int(bytes_accessed)),
    )(obs_pad, prepared["w_in"], prepared["b_in"], prepared["w1"], prepared["b1"],
      prepared["w2"], prepared["b2"], prepared["w_out"], prepared["b_out"])

    # Drop padding, then rearrange 'B (A C) -> B A C' == plain reshape.
    out_flat = out_flat[:B, :out_dim]
    return out_flat.reshape(B, action_dim, n_components)


def init_params(key, obs_dim, action_dim, n_components, hidden_dim, num_hidden_layer):
    """Deterministic synthetic parameter init (PyTorch-Linear-like scaling)."""
    out_dim = action_dim * n_components
    keys = jax.random.split(key, 8)

    def lin(k, fan_in, shape):
        bound = 1.0 / jnp.sqrt(fan_in)
        return jax.random.uniform(k, shape, jnp.float32, -bound, bound)

    w_in = lin(keys[0], obs_dim, (obs_dim, hidden_dim))
    b_in = lin(keys[1], obs_dim, (1, hidden_dim))
    w1 = lin(keys[2], hidden_dim, (num_hidden_layer, hidden_dim, hidden_dim))
    b1 = lin(keys[3], hidden_dim, (num_hidden_layer, 1, hidden_dim))
    w2 = lin(keys[4], hidden_dim, (num_hidden_layer, hidden_dim, hidden_dim))
    b2 = lin(keys[5], hidden_dim, (num_hidden_layer, 1, hidden_dim))
    w_out = lin(keys[6], hidden_dim, (hidden_dim, out_dim))
    b_out = lin(keys[7], hidden_dim, (1, out_dim))
    return (w_in, b_in, w1, b1, w2, b2, w_out, b_out)


def reference_forward(obs, params, *, action_dim, n_components):
    """Pure-JAX f32 reference of the module forward pass (the spec)."""
    w_in, b_in, w1, b1, w2, b2, w_out, b_out = params
    x = obs @ w_in + b_in
    for l in range(w1.shape[0]):
        h = jnp.maximum(x, 0.0) @ w1[l] + b1[l]
        h = jnp.maximum(h, 0.0) @ w2[l] + b2[l]
        x = x + h
    out = x @ w_out + b_out
    return out.reshape(obs.shape[0], action_dim, n_components)


def reference_forward_bf16(obs, params, *, action_dim, n_components):
    """Reference mimicking the kernel's bf16-operand / f32-accumulation matmuls."""
    def mm(x, w):
        return jnp.dot(x.astype(jnp.bfloat16), w.astype(jnp.bfloat16),
                       preferred_element_type=jnp.float32)

    w_in, b_in, w1, b1, w2, b2, w_out, b_out = params
    x = mm(obs, w_in) + b_in
    for l in range(w1.shape[0]):
        h = mm(jnp.maximum(x, 0.0), w1[l]) + b1[l]
        h = mm(jnp.maximum(h, 0.0), w2[l]) + b2[l]
        x = x + h
    out = mm(x, w_out) + b_out
    return out.reshape(obs.shape[0], action_dim, n_components)


if __name__ == "__main__":
    # Small, module-consistent shapes.
    B = 8
    obs_dim = 16
    action_dim = 4
    n_components = 8
    hidden_dim = 32
    num_hidden_layer = 2

    key = jax.random.PRNGKey(0)
    k_obs, k_params = jax.random.split(key)
    obs = jax.random.normal(k_obs, (B, obs_dim), jnp.float32)
    params = init_params(k_params, obs_dim, action_dim, n_components,
                         hidden_dim, num_hidden_layer)

    prepared, dims = prepare_params(params)           # one-time pad + bf16 cast
    actions = jax.block_until_ready(
        single_head_mlp_expert_forward(obs, prepared, dims,
                                       action_dim=action_dim,
                                       n_components=n_components))

    expected_bf16 = reference_forward_bf16(obs, params, action_dim=action_dim,
                                           n_components=n_components)
    expected_f32 = reference_forward(obs, params, action_dim=action_dim,
                                     n_components=n_components)

    assert actions.shape == (B, action_dim, n_components)
    # Tight check vs. a reference using the same bf16-operand / f32-accum matmuls.
    assert jnp.allclose(actions, expected_bf16, atol=1e-3, rtol=1e-3)
    # Loose check vs. the pure-f32 module semantics (bf16 weight quantization error).
    assert jnp.allclose(actions, expected_f32, atol=5e-2, rtol=5e-2)

    print("KERNEL_OK")
</pallas_src>

<mosaic_0001>
module attributes {stable_mosaic.version = 11 : i64} {
  func.func @_mlp_expert_kernel(%arg0: i32, %arg1: i32, %arg2: memref<16x128xbf16, #tpu.memory_space<vmem>>, %arg3: memref<128x128xbf16, #tpu.memory_space<vmem>>, %arg4: memref<1x128xf32, #tpu.memory_space<vmem>>, %arg5: memref<1x128x128xbf16, #tpu.memory_space<vmem>>, %arg6: memref<1x1x128xf32, #tpu.memory_space<vmem>>, %arg7: memref<1x128x128xbf16, #tpu.memory_space<vmem>>, %arg8: memref<1x1x128xf32, #tpu.memory_space<vmem>>, %arg9: memref<128x128xbf16, #tpu.memory_space<vmem>>, %arg10: memref<1x128xf32, #tpu.memory_space<vmem>>, %arg11: memref<16x128xf32, #tpu.memory_space<vmem>>, %arg12: memref<16x128xf32, #tpu.memory_space<vmem>>) attributes {dimension_semantics = [#tpu.dimension_semantics<parallel>, #tpu.dimension_semantics<arbitrary>], iteration_bounds = array<i64: 1, 2>, scalar_prefetch = 0 : i64, scratch_operands = 1 : i64, tpu.core_type = #tpu.core_type<tc>, window_params = [{transform_indices = @transform_0, window_bounds = array<i64: 16, 128>}, {pipeline_mode = #tpu.pipeline_mode<synchronous>, transform_indices = @transform_1, window_bounds = array<i64: 128, 128>}, {pipeline_mode = #tpu.pipeline_mode<synchronous>, transform_indices = @transform_2, window_bounds = array<i64: 1, 128>}, {transform_indices = @transform_3, window_bounds = array<i64: 1, 128, 128>}, {transform_indices = @transform_4, window_bounds = array<i64: 1, 1, 128>}, {transform_indices = @transform_5, window_bounds = array<i64: 1, 128, 128>}, {transform_indices = @transform_6, window_bounds = array<i64: 1, 1, 128>}, {pipeline_mode = #tpu.pipeline_mode<synchronous>, transform_indices = @transform_7, window_bounds = array<i64: 128, 128>}, {pipeline_mode = #tpu.pipeline_mode<synchronous>, transform_indices = @transform_8, window_bounds = array<i64: 1, 128>}, {transform_indices = @transform_9, window_bounds = array<i64: 16, 128>}]} {
    %c0_i32 = arith.constant 0 : i32
    %0 = arith.cmpi eq, %arg1, %c0_i32 : i32
    %1 = arith.extui %0 : i1 to i32
    %c0_i32_0 = arith.constant 0 : i32
    %2 = arith.cmpi ne, %1, %c0_i32_0 : i32
    scf.if %2 {
      %c0_20 = arith.constant 0 : index
      %c0_21 = arith.constant 0 : index
      %29 = vector.load %arg2[%c0_20, %c0_21] : memref<16x128xbf16, #tpu.memory_space<vmem>>, vector<16x128xbf16>
      %c0_22 = arith.constant 0 : index
      %c0_23 = arith.constant 0 : index
      %30 = vector.load %arg3[%c0_22, %c0_23] : memref<128x128xbf16, #tpu.memory_space<vmem>>, vector<128x128xbf16>
      %cst_24 = arith.constant dense<0.000000e+00> : vector<16x128xf32>
      %31 = tpu.matmul %29, %30, %cst_24 {dimension_numbers = #tpu.dot_dimension_numbers<[1], [0], [0], [1], [0, 0, 1, 1], [], []>} : vector<16x128xbf16>, vector<128x128xbf16>, vector<16x128xf32> -> vector<16x128xf32>
      %c0_25 = arith.constant 0 : index
      %c0_26 = arith.constant 0 : index
      %32 = vector.load %arg4[%c0_25, %c0_26] : memref<1x128xf32, #tpu.memory_space<vmem>>, vector<1x128xf32>
      %33 = vector.broadcast %32 : vector<1x128xf32> to vector<16x128xf32>
      %34 = arith.addf %31, %33 : vector<16x128xf32>
      %c0_27 = arith.constant 0 : index
      %c0_28 = arith.constant 0 : index
      %35 = vector.load %arg12[%c0_27, %c0_28] : memref<16x128xf32, #tpu.memory_space<vmem>>, vector<16x128xf32>
      tpu.vector_store %arg12[%c0_27, %c0_28], %34 {strides = array<i32>} : memref<16x128xf32, #tpu.memory_space<vmem>>, vector<16x128xf32>,
    } else {
    }
    %c0 = arith.constant 0 : index
    %c0_1 = arith.constant 0 : index
    %3 = vector.load %arg12[%c0, %c0_1] : memref<16x128xf32, #tpu.memory_space<vmem>>, vector<16x128xf32>
    %cst = arith.constant 0.000000e+00 : f32
    %4 = vector.broadcast %cst : f32 to vector<16x128xf32>
    %5 = arith.maximumf %3, %4 : vector<16x128xf32>
    %6 = arith.truncf %5 : vector<16x128xf32> to vector<16x128xbf16>
    %c0_2 = arith.constant 0 : index
    %c0_3 = arith.constant 0 : index
    %c0_4 = arith.constant 0 : index
    %7 = vector.load %arg5[%c0_2, %c0_3, %c0_4] : memref<1x128x128xbf16, #tpu.memory_space<vmem>>, vector<1x128x128xbf16>
    %8 = vector.shape_cast %7 : vector<1x128x128xbf16> to vector<128x128xbf16>
    %cst_5 = arith.constant dense<0.000000e+00> : vector<16x128xf32>
    %9 = tpu.matmul %6, %8, %cst_5 {dimension_numbers = #tpu.dot_dimension_numbers<[1], [0], [0], [1], [0, 0, 1, 1], [], []>} : vector<16x128xbf16>, vector<128x128xbf16>, vector<16x128xf32> -> vector<16x128xf32>
    %c0_6 = arith.constant 0 : index
    %c0_7 = arith.constant 0 : index
    %c0_8 = arith.constant 0 : index
    %10 = vector.load %arg6[%c0_6, %c0_7, %c0_8] : memref<1x1x128xf32, #tpu.memory_space<vmem>>, vector<1x1x128xf32>
    %11 = vector.shape_cast %10 : vector<1x1x128xf32> to vector<1x128xf32>
    %12 = vector.broadcast %11 : vector<1x128xf32> to vector<16x128xf32>
    %13 = arith.addf %9, %12 : vector<16x128xf32>
    %cst_9 = arith.constant 0.000000e+00 : f32
    %14 = vector.broadcast %cst_9 : f32 to vector<16x128xf32>
    %15 = arith.maximumf %13, %14 : vector<16x128xf32>
    %16 = arith.truncf %15 : vector<16x128xf32> to vector<16x128xbf16>
    %c0_10 = arith.constant 0 : index
    %c0_11 = arith.constant 0 : index
    %c0_12 = arith.constant 0 : index
    %17 = vector.load %arg7[%c0_10, %c0_11, %c0_12] : memref<1x128x128xbf16, #tpu.memory_space<vmem>>, vector<1x128x128xbf16>
    %18 = vector.shape_cast %17 : vector<1x128x128xbf16> to vector<128x128xbf16>
    %cst_13 = arith.constant dense<0.000000e+00> : vector<16x128xf32>
    %19 = tpu.matmul %16, %18, %cst_13 {dimension_numbers = #tpu.dot_dimension_numbers<[1], [0], [0], [1], [0, 0, 1, 1], [], []>} : vector<16x128xbf16>, vector<128x128xbf16>, vector<16x128xf32> -> vector<16x128xf32>
    %c0_14 = arith.constant 0 : index
    %c0_15 = arith.constant 0 : index
    %c0_16 = arith.constant 0 : index
    %20 = vector.load %arg8[%c0_14, %c0_15, %c0_16] : memref<1x1x128xf32, #tpu.memory_space<vmem>>, vector<1x1x128xf32>
    %21 = vector.shape_cast %20 : vector<1x1x128xf32> to vector<1x128xf32>
    %22 = vector.broadcast %21 : vector<1x128xf32> to vector<16x128xf32>
    %23 = arith.addf %19, %22 : vector<16x128xf32>
    %24 = arith.addf %3, %23 : vector<16x128xf32>
    %c0_17 = arith.constant 0 : index
    %c0_18 = arith.constant 0 : index
    %25 = vector.load %arg12[%c0_17, %c0_18] : memref<16x128xf32, #tpu.memory_space<vmem>>, vector<16x128xf32>
    tpu.vector_store %arg12[%c0_17, %c0_18], %24 {strides = array<i32>} : memref<16x128xf32, #tpu.memory_space<vmem>>, vector<16x128xf32>,
    %c1_i32 = arith.constant 1 : i32
    %26 = arith.cmpi eq, %arg1, %c1_i32 : i32
    %27 = arith.extui %26 : i1 to i32
    %c0_i32_19 = arith.constant 0 : i32
    %28 = arith.cmpi ne, %27, %c0_i32_19 : i32
    scf.if %28 {
      %29 = arith.truncf %24 : vector<16x128xf32> to vector<16x128xbf16>
      %c0_20 = arith.constant 0 : index
      %c0_21 = arith.constant 0 : index
      %30 = vector.load %arg9[%c0_20, %c0_21] : memref<128x128xbf16, #tpu.memory_space<vmem>>, vector<128x128xbf16>
      %cst_22 = arith.constant dense<0.000000e+00> : vector<16x128xf32>
      %31 = tpu.matmul %29, %30, %cst_22 {dimension_numbers = #tpu.dot_dimension_numbers<[1], [0], [0], [1], [0, 0, 1, 1], [], []>} : vector<16x128xbf16>, vector<128x128xbf16>, vector<16x128xf32> -> vector<16x128xf32>
      %c0_23 = arith.constant 0 : index
      %c0_24 = arith.constant 0 : index
      %32 = vector.load %arg10[%c0_23, %c0_24] : memref<1x128xf32, #tpu.memory_space<vmem>>, vector<1x128xf32>
      %33 = vector.broadcast %32 : vector<1x128xf32> to vector<16x128xf32>
      %34 = arith.addf %31, %33 : vector<16x128xf32>
      %c0_25 = arith.constant 0 : index
      %c0_26 = arith.constant 0 : index
      %35 = vector.load %arg11[%c0_25, %c0_26] : memref<16x128xf32, #tpu.memory_space<vmem>>, vector<16x128xf32>
      tpu.vector_store %arg11[%c0_25, %c0_26], %34 {strides = array<i32>} : memref<16x128xf32, #tpu.memory_space<vmem>>, vector<16x128xf32>,
    } else {
    }
    return
  }
  func.func @transform_0(%arg0: i32, %arg1: i32) -> (i32, i32) {
    %c0_i32 = arith.constant 0 : i32
    %c0_i32_0 = arith.constant 0 : i32
    return %arg0, %c0_i32 : i32, i32
  }
  func.func @transform_1(%arg0: i32, %arg1: i32) -> (i32, i32) {
    %c0_i32 = arith.constant 0 : i32
    %c0_i32_0 = arith.constant 0 : i32
    %c0_i32_1 = arith.constant 0 : i32
    return %c0_i32, %c0_i32_0 : i32, i32
  }
  func.func @transform_2(%arg0: i32, %arg1: i32) -> (i32, i32) {
    %c0_i32 = arith.constant 0 : i32
    %c0_i32_0 = arith.constant 0 : i32
    %c0_i32_1 = arith.constant 0 : i32
    return %c0_i32, %c0_i32_0 : i32, i32
  }
  func.func @transform_3(%arg0: i32, %arg1: i32) -> (i32, i32, i32) {
    %c0_i32 = arith.constant 0 : i32
    %c0_i32_0 = arith.constant 0 : i32
    %c0_i32_1 = arith.constant 0 : i32
    return %arg1, %c0_i32, %c0_i32_0 : i32, i32, i32
  }
  func.func @transform_4(%arg0: i32, %arg1: i32) -> (i32, i32, i32) {
    %c0_i32 = arith.constant 0 : i32
    %c0_i32_0 = arith.constant 0 : i32
    %c0_i32_1 = arith.constant 0 : i32
    return %arg1, %c0_i32, %c0_i32_0 : i32, i32, i32
  }
  func.func @transform_5(%arg0: i32, %arg1: i32) -> (i32, i32, i32) {
    %c0_i32 = arith.constant 0 : i32
    %c0_i32_0 = arith.constant 0 : i32
    %c0_i32_1 = arith.constant 0 : i32
    return %arg1, %c0_i32, %c0_i32_0 : i32, i32, i32
  }
  func.func @transform_6(%arg0: i32, %arg1: i32) -> (i32, i32, i32) {
    %c0_i32 = arith.constant 0 : i32
    %c0_i32_0 = arith.constant 0 : i32
    %c0_i32_1 = arith.constant 0 : i32
    return %arg1, %c0_i32, %c0_i32_0 : i32, i32, i32
  }
  func.func @transform_7(%arg0: i32, %arg1: i32) -> (i32, i32) {
    %c0_i32 = arith.constant 0 : i32
    %c0_i32_0 = arith.constant 0 : i32
    %c0_i32_1 = arith.constant 0 : i32
    return %c0_i32, %c0_i32_0 : i32, i32
  }
  func.func @transform_8(%arg0: i32, %arg1: i32) -> (i32, i32) {
    %c0_i32 = arith.constant 0 : i32
    %c0_i32_0 = arith.constant 0 : i32
    %c0_i32_1 = arith.constant 0 : i32
    return %c0_i32, %c0_i32_0 : i32, i32
  }
  func.func @transform_9(%arg0: i32, %arg1: i32) -> (i32, i32) {
    %c0_i32 = arith.constant 0 : i32
    %c0_i32_0 = arith.constant 0 : i32
    return %arg0, %c0_i32 : i32, i32
  }
}

</mosaic_0001>

<llo_original>
// kernel: tpu_custom_call.1
$region0: #{tpu_custom_call.1}
  #allocation0 [shape = 'u32[]', space=smem, size = 0x4, offset = 0x4, fixed_abs, tag = 'smem constant byte address 0x4 - core index']
  #allocation1 [shape = 'u32[72,128]{1,0:T(1,128)}', space=vmem, size = 0x9000, scoped, tag = 'internal scratch']
  #allocation2 [shape = 'f32[16,128]{1,0:T(8,128)}', space=vmem, size = 0x2000, scoped, tag = 'scratch operand']
  %s0 = inlined_call_operand.hbm [shape: bf16[16,128], index: 0, kind: input, shape index: {}]
  %s1 = inlined_call_operand.hbm [shape: bf16[128,128], index: 1, kind: input, shape index: {}]
  %s2 = inlined_call_operand.hbm [shape: f32[1,128], index: 2, kind: input, shape index: {}]
  %s3 = inlined_call_operand.hbm [shape: bf16[2,128,128], index: 3, kind: input, shape index: {}]
  %s4 = inlined_call_operand.vmem [shape: f32[2,1,128], index: 4, kind: input, shape index: {}]
  %s5 = inlined_call_operand.hbm [shape: bf16[2,128,128], index: 5, kind: input, shape index: {}]
  %s6 = inlined_call_operand.vmem [shape: f32[2,1,128], index: 6, kind: input, shape index: {}]
  %s7 = inlined_call_operand.hbm [shape: bf16[128,128], index: 7, kind: input, shape index: {}]
  %s8 = inlined_call_operand.vmem [shape: f32[1,128], index: 8, kind: input, shape index: {}]
  %s9 = inlined_call_operand.hbm [shape: f32[16,128], index: 9, kind: output, shape index: {}]
  %s10 = sld [smem:[#allocation0]]
  $region101: #{tpu_custom_call.1} parent=0
    _
  %s12 = ssub.s32 1, %s10
  %s13 = scalar_select 0, %s12, %s10
  $region1: #{tpu_custom_call.1} parent=0
    #allocation3 [shape = 'u8[4096]{0}', space=vmem, size = 0x1000, scoped, tag = 'input window, operand 0, single buffered']
    #allocation4 [shape = 's32[2]{0}', space=sflag, size = 0x8, scoped, tag = 'scoped memory for tpu_custom_call.1']
    #allocation5 [shape = 's32[2]{0}', space=sflag, size = 0x8, scoped, tag = 'scoped memory for tpu_custom_call.1']
    #allocation6 [shape = 'u8[32768]{0}', space=vmem, size = 0x8000, scoped, tag = 'input window, operand 1, single buffered']
    #allocation7 [shape = 's32[1]{0}', space=sflag, size = 0x4, scoped, tag = 'scoped memory for tpu_custom_call.1']
    #allocation8 [shape = 'u8[512]{0}', space=vmem, size = 0x400, scoped, tag = 'input window, operand 2, single buffered']
    #allocation9 [shape = 'u8[65536]{0}', space=vmem, size = 0x10000, scoped, tag = 'input window, operand 3']
    #allocation10 [shape = 's32[2]{0}', space=sflag, size = 0x8, scoped, tag = 'scoped memory for tpu_custom_call.1']
    #allocation11 [shape = 'u8[65536]{0}', space=vmem, size = 0x10000, scoped, tag = 'input window, operand 5']
    #allocation12 [shape = 'u8[32768]{0}', space=vmem, size = 0x8000, scoped, tag = 'input window, operand 7, single buffered']
    #allocation13 [shape = 's32[1]{0}', space=sflag, size = 0x4, scoped, tag = 'scoped memory for tpu_custom_call.1']
    #allocation14 [shape = 'u8[8192]{0}', space=vmem, size = 0x2000, scoped, tag = 'output window, operand 0, single buffered']
    %14 = vsyncpa [#allocation4], 0
    %15 = vsyncpa [#allocation7], 0
    %16 = vsyncpa [#allocation10], 0
    %s17 = scalar_lea.sflag [#allocation10], 1
    %18 = vsyncpa %s17, 0
    %19 = vsyncpa [#allocation13], 0
    %20 = vsyncpa [#allocation5], 0
    loop: start=0, step=1, limit=4
    $region2: #{tpu_custom_call.1} parent=1 // loop_pre_header
      _
    $region3: #{tpu_custom_call.1} parent=1 // loop_header
      %s22 = sphi 0, %s26
      %p23 = scmp.ge.s32.totalorder %s22, 4
      %s29 = sphi 0, %s41
      %s30 = sphi 0, %s37
      %s31 = sphi 0, %s29
      %s32 = sphi 0, %s30
      %s33 = sphi 0, %s31
      %s34 = sphi 0, %s32
      %s44 = sphi 0, %s46
      %s47 = sphi 0, %s44
      %s48 = sphi 0, %s47
      %s64 = sphi 0, %s48
      %s68 = sphi 0, %s68
      %s70 = sphi 0, %s68
      %s71 = sphi 0, %s70
      %s85 = sphi 0, %s71
      %s89 = sphi 0, %s89
      %s91 = sphi 0, %s89
      %s92 = sphi 0, %s91
      %s106 = sphi 0, %s92
      %s112 = sphi 0, %s114
      %s115 = sphi 0, %s112
      %s116 = sphi 0, %s115
      %s132 = sphi 0, %s116
      %s138 = sphi 0, %s140
      %s141 = sphi 0, %s138
      %s142 = sphi 0, %s141
      %s158 = sphi 0, %s142
      %s164 = sphi 0, %s166
      %s167 = sphi 0, %s164
      %s168 = sphi 0, %s167
      %s184 = sphi 0, %s168
      %s190 = sphi 0, %s192
      %s193 = sphi 0, %s190
      %s194 = sphi 0, %s193
      %s210 = sphi 0, %s194
      %s214 = sphi 0, %s214
      %s216 = sphi 0, %s214
      %s217 = sphi 0, %s216
      %s231 = sphi 0, %s217
      %s235 = sphi 0, %s235
      %s237 = sphi 0, %s235
      %s238 = sphi 0, %s237
      %s252 = sphi 0, %s238
      %s258 = sphi 0, %s260
      %s261 = sphi 0, %s258
      %s262 = sphi 0, %s261
      %s278 = sphi 0, %s262
    $region4: #{tpu_custom_call.1} parent=1 // loop_header_branch
      %25 = sbr.rel (%p23) target = $region8
    $region5: #{tpu_custom_call.1} parent=1 // loop_body
      %s27 = ssub.s32 %s22, 1
      %s28 = ssub.s32 %s22, 2
      %s35 = sadd.s32 1, %s30
      %p36 = scmp.ge.s32.totalorder %s35, 2
      %s37 = scalar_select %p36, 0, %s35
      %s38 = sadd.s32 1, %s29
      %s39 = scalar_select %p36, %s38, %s29
      %p40 = scmp.ge.s32.totalorder %s39, 1
      %s41 = scalar_select %p40, 0, %s39
      %s42 = ssub.s32 %s29, %s41
      %p43 = scmp.eq.s32.totalorder %s42, 0
      %s45 = sadd.s32 %s44, 1
      %s46 = scalar_select %p43, %s44, %s45
      %p49 = pneg %p43
      %p50 = scmp.eq.s32.totalorder %s22, 1
      %p51 = por %p49, %p50
      %p52 = scmp.ne.s32.totalorder %s44, %s47
      %p53 = scmp.eq.s32.totalorder %s22, 0
      %p54 = por %p52, %p53
      %p55 = scmp.ne.s32.totalorder %s44, %s47
      %p56 = scmp.eq.s32.totalorder %s27, 1
      %p57 = por %p55, %p56
      %p58 = scmp.ne.s32.totalorder %s47, %s48
      %p59 = scmp.eq.s32.totalorder %s27, 0
      %p60 = por %p58, %p59
      %p61 = scmp.ne.s32.totalorder %s47, %s48
      %p62 = scmp.eq.s32.totalorder %s28, 1
      %p63 = por %p61, %p62
      %p65 = scmp.ne.s32.totalorder %s48, %s64
      %p66 = scmp.eq.s32.totalorder %s28, 0
      %p67 = por %p65, %p66
      %s69 = sadd.s32 %s68, 1
      %p72 = scmp.eq.s32.totalorder %s22, 1
      %p73 = scmp.ne.s32.totalorder %s68, %s70
      %p74 = scmp.eq.s32.totalorder %s22, 0
      %p75 = por %p73, %p74
      %p76 = scmp.ne.s32.totalorder %s68, %s70
      %p77 = scmp.eq.s32.totalorder %s27, 1
      %p78 = por %p76, %p77
      %p79 = scmp.ne.s32.totalorder %s70, %s71
      %p80 = scmp.eq.s32.totalorder %s27, 0
      %p81 = por %p79, %p80
      %p82 = scmp.ne.s32.totalorder %s70, %s71
      %p83 = scmp.eq.s32.totalorder %s28, 1
      %p84 = por %p82, %p83
      %p86 = scmp.ne.s32.totalorder %s71, %s85
      %p87 = scmp.eq.s32.totalorder %s28, 0
      %p88 = por %p86, %p87
      %s90 = sadd.s32 %s89, 1
      %p93 = scmp.eq.s32.totalorder %s22, 1
      %p94 = scmp.ne.s32.totalorder %s89, %s91
      %p95 = scmp.eq.s32.totalorder %s22, 0
      %p96 = por %p94, %p95
      %p97 = scmp.ne.s32.totalorder %s89, %s91
      %p98 = scmp.eq.s32.totalorder %s27, 1
      %p99 = por %p97, %p98
      %p100 = scmp.ne.s32.totalorder %s91, %s92
      %p101 = scmp.eq.s32.totalorder %s27, 0
      %p102 = por %p100, %p101
      %p103 = scmp.ne.s32.totalorder %s91, %s92
      %p104 = scmp.eq.s32.totalorder %s28, 1
      %p105 = por %p103, %p104
      %p107 = scmp.ne.s32.totalorder %s92, %s106
      %p108 = scmp.eq.s32.totalorder %s28, 0
      %p109 = por %p107, %p108
      %s110 = ssub.s32 %s30, %s37
      %p111 = scmp.eq.s32.totalorder %s110, 0
      %s113 = sadd.s32 %s112, 1
      %s114 = scalar_select %p111, %s112, %s113
      %p117 = pneg %p111
      %p118 = scmp.eq.s32.totalorder %s22, 1
      %p119 = por %p117, %p118
      %p120 = scmp.ne.s32.totalorder %s112, %s115
      %p121 = scmp.eq.s32.totalorder %s22, 0
      %p122 = por %p120, %p121
      %p123 = scmp.ne.s32.totalorder %s112, %s115
      %p124 = scmp.eq.s32.totalorder %s27, 1
      %p125 = por %p123, %p124
      %p126 = scmp.ne.s32.totalorder %s115, %s116
      %p127 = scmp.eq.s32.totalorder %s27, 0
      %p128 = por %p126, %p127
      %p129 = scmp.ne.s32.totalorder %s115, %s116
      %p130 = scmp.eq.s32.totalorder %s28, 1
      %p131 = por %p129, %p130
      %p133 = scmp.ne.s32.totalorder %s116, %s132
      %p134 = scmp.eq.s32.totalorder %s28, 0
      %p135 = por %p133, %p134
      %s136 = ssub.s32 %s30, %s37
      %p137 = scmp.eq.s32.totalorder %s136, 0
      %s139 = sadd.s32 %s138, 1
      %s140 = scalar_select %p137, %s138, %s139
      %p143 = pneg %p137
      %p144 = scmp.eq.s32.totalorder %s22, 1
      %p145 = por %p143, %p144
      %p146 = scmp.ne.s32.totalorder %s138, %s141
      %p147 = scmp.eq.s32.totalorder %s22, 0
      %p148 = por %p146, %p147
      %p149 = scmp.ne.s32.totalorder %s138, %s141
      %p150 = scmp.eq.s32.totalorder %s27, 1
      %p151 = por %p149, %p150
      %p152 = scmp.ne.s32.totalorder %s141, %s142
      %p153 = scmp.eq.s32.totalorder %s27, 0
      %p154 = por %p152, %p153
      %p155 = scmp.ne.s32.totalorder %s141, %s142
      %p156 = scmp.eq.s32.totalorder %s28, 1
      %p157 = por %p155, %p156
      %p159 = scmp.ne.s32.totalorder %s142, %s158
      %p160 = scmp.eq.s32.totalorder %s28, 0
      %p161 = por %p159, %p160
      %s162 = ssub.s32 %s30, %s37
      %p163 = scmp.eq.s32.totalorder %s162, 0
      %s165 = sadd.s32 %s164, 1
      %s166 = scalar_select %p163, %s164, %s165
      %p169 = pneg %p163
      %p170 = scmp.eq.s32.totalorder %s22, 1
      %p171 = por %p169, %p170
      %p172 = scmp.ne.s32.totalorder %s164, %s167
      %p173 = scmp.eq.s32.totalorder %s22, 0
      %p174 = por %p172, %p173
      %p175 = scmp.ne.s32.totalorder %s164, %s167
      %p176 = scmp.eq.s32.totalorder %s27, 1
      %p177 = por %p175, %p176
      %p178 = scmp.ne.s32.totalorder %s167, %s168
      %p179 = scmp.eq.s32.totalorder %s27, 0
      %p180 = por %p178, %p179
      %p181 = scmp.ne.s32.totalorder %s167, %s168
      %p182 = scmp.eq.s32.totalorder %s28, 1
      %p183 = por %p181, %p182
      %p185 = scmp.ne.s32.totalorder %s168, %s184
      %p186 = scmp.eq.s32.totalorder %s28, 0
      %p187 = por %p185, %p186
      %s188 = ssub.s32 %s30, %s37
      %p189 = scmp.eq.s32.totalorder %s188, 0
      %s191 = sadd.s32 %s190, 1
      %s192 = scalar_select %p189, %s190, %s191
      %p195 = pneg %p189
      %p196 = scmp.eq.s32.totalorder %s22, 1
      %p197 = por %p195, %p196
      %p198 = scmp.ne.s32.totalorder %s190, %s193
      %p199 = scmp.eq.s32.totalorder %s22, 0
      %p200 = por %p198, %p199
      %p201 = scmp.ne.s32.totalorder %s190, %s193
      %p202 = scmp.eq.s32.totalorder %s27, 1
      %p203 = por %p201, %p202
      %p204 = scmp.ne.s32.totalorder %s193, %s194
      %p205 = scmp.eq.s32.totalorder %s27, 0
      %p206 = por %p204, %p205
      %p207 = scmp.ne.s32.totalorder %s193, %s194
      %p208 = scmp.eq.s32.totalorder %s28, 1
      %p209 = por %p207, %p208
      %p211 = scmp.ne.s32.totalorder %s194, %s210
      %p212 = scmp.eq.s32.totalorder %s28, 0
      %p213 = por %p211, %p212
      %s215 = sadd.s32 %s214, 1
      %p218 = scmp.eq.s32.totalorder %s22, 1
      %p219 = scmp.ne.s32.totalorder %s214, %s216
      %p220 = scmp.eq.s32.totalorder %s22, 0
      %p221 = por %p219, %p220
      %p222 = scmp.ne.s32.totalorder %s214, %s216
      %p223 = scmp.eq.s32.totalorder %s27, 1
      %p224 = por %p222, %p223
      %p225 = scmp.ne.s32.totalorder %s216, %s217
      %p226 = scmp.eq.s32.totalorder %s27, 0
      %p227 = por %p225, %p226
      %p228 = scmp.ne.s32.totalorder %s216, %s217
      %p229 = scmp.eq.s32.totalorder %s28, 1
      %p230 = por %p228, %p229
      %p232 = scmp.ne.s32.totalorder %s217, %s231
      %p233 = scmp.eq.s32.totalorder %s28, 0
      %p234 = por %p232, %p233
      %s236 = sadd.s32 %s235, 1
      %p239 = scmp.eq.s32.totalorder %s22, 1
      %p240 = scmp.ne.s32.totalorder %s235, %s237
      %p241 = scmp.eq.s32.totalorder %s22, 0
      %p242 = por %p240, %p241
      %p243 = scmp.ne.s32.totalorder %s235, %s237
      %p244 = scmp.eq.s32.totalorder %s27, 1
      %p245 = por %p243, %p244
      %p246 = scmp.ne.s32.totalorder %s237, %s238
      %p247 = scmp.eq.s32.totalorder %s27, 0
      %p248 = por %p246, %p247
      %p249 = scmp.ne.s32.totalorder %s237, %s238
      %p250 = scmp.eq.s32.totalorder %s28, 1
      %p251 = por %p249, %p250
      %p253 = scmp.ne.s32.totalorder %s238, %s252
      %p254 = scmp.eq.s32.totalorder %s28, 0
      %p255 = por %p253, %p254
      %s256 = ssub.s32 %s29, %s41
      %p257 = scmp.eq.s32.totalorder %s256, 0
      %s259 = sadd.s32 %s258, 1
      %s260 = scalar_select %p257, %s258, %s259
      %p263 = pneg %p257
      %p264 = scmp.eq.s32.totalorder %s22, 1
      %p265 = por %p263, %p264
      %p266 = scmp.ne.s32.totalorder %s258, %s261
      %p267 = scmp.eq.s32.totalorder %s22, 0
      %p268 = por %p266, %p267
      %p269 = scmp.ne.s32.totalorder %s258, %s261
      %p270 = scmp.eq.s32.totalorder %s27, 1
      %p271 = por %p269, %p270
      %p272 = scmp.ne.s32.totalorder %s261, %s262
      %p273 = scmp.eq.s32.totalorder %s27, 0
      %p274 = por %p272, %p273
      %p275 = scmp.ne.s32.totalorder %s261, %s262
      %p276 = scmp.eq.s32.totalorder %s28, 1
      %p277 = por %p275, %p276
      %p279 = scmp.ne.s32.totalorder %s262, %s278
      %p280 = scmp.eq.s32.totalorder %s28, 0
      %p281 = por %p279, %p280
      %p282 = scmp.le.s32.totalorder 1, %s22
      %p283 = scmp.lt.s32.totalorder %s22, 3
      %p284 = pnand %p282, %p283
      %p285 = pneg %p284
      // Predicated region
      $region9: #{tpu_custom_call.1} parent=5 // pred_check
        _
      $region10: #{tpu_custom_call.1} parent=5 // pred_check_branch
        %287 = sbr.rel (%p284) target = $region12
      $region11: #{tpu_custom_call.1} parent=5 // pred_region
        %s288 = ssub.s32 %s22, 1
        // Predicated region
        $region13: #{tpu_custom_call.1} parent=11 // pred_check
          %p289 = pneg %p60
        $region14: #{tpu_custom_call.1} parent=11 // pred_check_branch
          %291 = sbr.rel (%p289) target = $region16
        $region15: #{tpu_custom_call.1} parent=11 // pred_region
          %s292 = smul.u32 2, %s31
          %294 = vsyncadd [#allocation4], 0
          %s295 = smul.addr %s292, 4
          %s296 = scalar_lea.hbm %s0, %s295
          %s297 = sshll.u32 %s296, 4
          %s298 = int_to_ptr.hbm [resolvable:$true] %s297
          %s299 = sshll.u32 [#allocation3], 4
          %s300 = int_to_ptr.vmem [resolvable:$true] %s299
          %305 = dma.hbm_to_vmem [thread:$0]  %s298, 128, %s300, [#allocation4], 64, 64, 4
        $region16: #{tpu_custom_call.1} parent=11 // pred_fallthru
          _
        // Predicated region
        $region17: #{tpu_custom_call.1} parent=11 // pred_check
          %p306 = pneg %p81
        $region18: #{tpu_custom_call.1} parent=11 // pred_check_branch
          %308 = sbr.rel (%p306) target = $region20
        $region19: #{tpu_custom_call.1} parent=11 // pred_region
          %310 = vsyncadd [#allocation7], 0
          %s311 = sshll.u32 %s1, 4
          %s312 = int_to_ptr.hbm [resolvable:$true] %s311
          %s313 = sshll.u32 [#allocation6], 4
          %s314 = int_to_ptr.vmem [resolvable:$true] %s313
          %319 = dma.hbm_to_vmem [thread:$0]  %s312, 1024, %s314, [#allocation7], 64, 64, 4
        $region20: #{tpu_custom_call.1} parent=11 // pred_fallthru
          _
        // Predicated region
        $region21: #{tpu_custom_call.1} parent=11 // pred_check
          %p320 = pneg %p102
        $region22: #{tpu_custom_call.1} parent=11 // pred_check_branch
          %322 = sbr.rel (%p320) target = $region24
        $region23: #{tpu_custom_call.1} parent=11 // pred_region
          %324 = vsyncadd [#allocation7], 0
          %s326 = sshll.u32 %s2, 4
          %s327 = int_to_ptr.hbm [resolvable:$true] %s326
          %s328 = sshll.u32 [#allocation8], 4
          %s329 = int_to_ptr.vmem [resolvable:$true] %s328
          %331 = dma.hbm_to_vmem [thread:$0]  %s327, 16, %s329, [#allocation7]
        $region24: #{tpu_custom_call.1} parent=11 // pred_fallthru
          _
        // Predicated region
        $region25: #{tpu_custom_call.1} parent=11 // pred_check
          %p332 = pneg %p227
        $region26: #{tpu_custom_call.1} parent=11 // pred_check_branch
          %334 = sbr.rel (%p332) target = $region28
        $region27: #{tpu_custom_call.1} parent=11 // pred_region
          %336 = vsyncadd [#allocation13], 0
          %s337 = sshll.u32 %s7, 4
          %s338 = int_to_ptr.hbm [resolvable:$true] %s337
          %s339 = sshll.u32 [#allocation12], 4
          %s340 = int_to_ptr.vmem [resolvable:$true] %s339
          %345 = dma.hbm_to_vmem [thread:$0]  %s338, 1024, %s340, [#allocation13], 64, 64, 4
        $region28: #{tpu_custom_call.1} parent=11 // pred_fallthru
          _
        // Predicated region
        $region29: #{tpu_custom_call.1} parent=11 // pred_check
          %p346 = pneg %p248
        $region30: #{tpu_custom_call.1} parent=11 // pred_check_branch
          %348 = sbr.rel (%p346) target = $region32
        $region31: #{tpu_custom_call.1} parent=11 // pred_region
          _
        $region32: #{tpu_custom_call.1} parent=11 // pred_fallthru
          _
      $region12: #{tpu_custom_call.1} parent=5 // pred_fallthru
        _
      %p349 = scmp.lt.s32.totalorder %s22, 2
      // Predicated region
      $region33: #{tpu_custom_call.1} parent=5 // pred_check
        %p350 = pneg %p349
      $region34: #{tpu_custom_call.1} parent=5 // pred_check_branch
        %352 = sbr.rel (%p350) target = $region36
      $region35: #{tpu_custom_call.1} parent=5 // pred_region
        // Predicated region
        $region37: #{tpu_custom_call.1} parent=35 // pred_check
          %p353 = pneg %p122
        $region38: #{tpu_custom_call.1} parent=35 // pred_check_branch
          %355 = sbr.rel (%p353) target = $region40
        $region39: #{tpu_custom_call.1} parent=35 // pred_region
          %s356 = sand.u32 %s22, 1
          %s357 = scalar_lea.sflag [#allocation10], %s356
          %s358 = sand.u32 %s112, 1
          %s359 = smul.addr %s358, 64
          %s360 = scalar_lea.vmem [#allocation9], %s359
          %362 = vsyncadd %s357, 0
          %s363 = smul.addr %s30, 16
          %s364 = smul.addr %s363, 4
          %s365 = scalar_lea.hbm %s3, %s364
          %s366 = sshll.u32 %s365, 4
          %s367 = int_to_ptr.hbm [resolvable:$true] %s366
          %s368 = sshll.u32 %s360, 4
          %s369 = int_to_ptr.vmem [resolvable:$true] %s368
          %374 = dma.hbm_to_vmem [thread:$0]  %s367, 1024, %s369, %s357, 64, 64, 4
        $region40: #{tpu_custom_call.1} parent=35 // pred_fallthru
          _
        // Predicated region
        $region41: #{tpu_custom_call.1} parent=35 // pred_check
          %p375 = pneg %p148
        $region42: #{tpu_custom_call.1} parent=35 // pred_check_branch
          %377 = sbr.rel (%p375) target = $region44
        $region43: #{tpu_custom_call.1} parent=35 // pred_region
          %p378 = scmp.lt.s32.totalorder %s30, 1
          %s379 = scalar_select %p378, %s30, 1
          %s380 = scalar_lea.vmem %s4, %s379
        $region44: #{tpu_custom_call.1} parent=35 // pred_fallthru
          _
        // Predicated region
        $region45: #{tpu_custom_call.1} parent=35 // pred_check
          %p381 = pneg %p174
        $region46: #{tpu_custom_call.1} parent=35 // pred_check_branch
          %383 = sbr.rel (%p381) target = $region48
        $region47: #{tpu_custom_call.1} parent=35 // pred_region
          %s384 = sand.u32 %s22, 1
          %s385 = scalar_lea.sflag [#allocation10], %s384
          %s386 = sand.u32 %s164, 1
          %s387 = smul.addr %s386, 64
          %s388 = scalar_lea.vmem [#allocation11], %s387
          %390 = vsyncadd %s385, 0
          %s391 = smul.addr %s30, 16
          %s392 = smul.addr %s391, 4
          %s393 = scalar_lea.hbm %s5, %s392
          %s394 = sshll.u32 %s393, 4
          %s395 = int_to_ptr.hbm [resolvable:$true] %s394
          %s396 = sshll.u32 %s388, 4
          %s397 = int_to_ptr.vmem [resolvable:$true] %s396
          %402 = dma.hbm_to_vmem [thread:$0]  %s395, 1024, %s397, %s385, 64, 64, 4
        $region48: #{tpu_custom_call.1} parent=35 // pred_fallthru
          _
        // Predicated region
        $region49: #{tpu_custom_call.1} parent=35 // pred_check
          %p403 = pneg %p200
        $region50: #{tpu_custom_call.1} parent=35 // pred_check_branch
          %405 = sbr.rel (%p403) target = $region52
        $region51: #{tpu_custom_call.1} parent=35 // pred_region
          %p406 = scmp.lt.s32.totalorder %s30, 1
          %s407 = scalar_select %p406, %s30, 1
          %s408 = scalar_lea.vmem %s6, %s407
        $region52: #{tpu_custom_call.1} parent=35 // pred_fallthru
          _
      $region36: #{tpu_custom_call.1} parent=5 // pred_fallthru
        _
      %p409 = scmp.le.s32.totalorder 1, %s22
      %p410 = scmp.lt.s32.totalorder %s22, 3
      %p411 = pnand %p409, %p410
      %p412 = pneg %p411
      // Predicated region
      $region53: #{tpu_custom_call.1} parent=5 // pred_check
        _
      $region54: #{tpu_custom_call.1} parent=5 // pred_check_branch
        %414 = sbr.rel (%p411) target = $region56
      $region55: #{tpu_custom_call.1} parent=5 // pred_region
        %s415 = ssub.s32 %s22, 1
        // Predicated region
        $region57: #{tpu_custom_call.1} parent=55 // pred_check
          %p416 = pneg %p60
        $region58: #{tpu_custom_call.1} parent=55 // pred_check_branch
          %418 = sbr.rel (%p416) target = $region60
        $region59: #{tpu_custom_call.1} parent=55 // pred_region
          %420 = dma.done [#allocation4], 128
        $region60: #{tpu_custom_call.1} parent=55 // pred_fallthru
          _
        // Predicated region
        $region61: #{tpu_custom_call.1} parent=55 // pred_check
          %p421 = pneg %p81
        $region62: #{tpu_custom_call.1} parent=55 // pred_check_branch
          %423 = sbr.rel (%p421) target = $region64
        $region63: #{tpu_custom_call.1} parent=55 // pred_region
          %425 = dma.done [#allocation7], 1024
        $region64: #{tpu_custom_call.1} parent=55 // pred_fallthru
          _
        // Predicated region
        $region65: #{tpu_custom_call.1} parent=55 // pred_check
          %p426 = pneg %p102
        $region66: #{tpu_custom_call.1} parent=55 // pred_check_branch
          %428 = sbr.rel (%p426) target = $region68
        $region67: #{tpu_custom_call.1} parent=55 // pred_region
          %430 = dma.done [#allocation7], 16
        $region68: #{tpu_custom_call.1} parent=55 // pred_fallthru
          _
        %s431 = sand.u32 %s27, 1
        %s432 = scalar_lea.sflag [#allocation10], %s431
        %s433 = sand.u32 %s115, 1
        %s434 = smul.addr %s433, 64
        %s435 = scalar_lea.vmem [#allocation9], %s434
        // Predicated region
        $region69: #{tpu_custom_call.1} parent=55 // pred_check
          %p436 = pneg %p128
        $region70: #{tpu_custom_call.1} parent=55 // pred_check_branch
          %438 = sbr.rel (%p436) target = $region72
        $region71: #{tpu_custom_call.1} parent=55 // pred_region
          %440 = dma.done %s432, 1024
        $region72: #{tpu_custom_call.1} parent=55 // pred_fallthru
          _
        %s441 = sand.u32 %s27, 1
        %s442 = scalar_lea.sflag [#allocation10], %s441
        %s443 = sand.u32 %s167, 1
        %s444 = smul.addr %s443, 64
        %s445 = scalar_lea.vmem [#allocation11], %s444
        // Predicated region
        $region73: #{tpu_custom_call.1} parent=55 // pred_check
          %p446 = pneg %p180
        $region74: #{tpu_custom_call.1} parent=55 // pred_check_branch
          %448 = sbr.rel (%p446) target = $region76
        $region75: #{tpu_custom_call.1} parent=55 // pred_region
          %450 = dma.done %s442, 1024
        $region76: #{tpu_custom_call.1} parent=55 // pred_fallthru
          _
        // Predicated region
        $region77: #{tpu_custom_call.1} parent=55 // pred_check
          %p451 = pneg %p227
        $region78: #{tpu_custom_call.1} parent=55 // pred_check_branch
          %453 = sbr.rel (%p451) target = $region80
        $region79: #{tpu_custom_call.1} parent=55 // pred_region
          %455 = dma.done [#allocation13], 1024
        $region80: #{tpu_custom_call.1} parent=55 // pred_fallthru
          _
        %p456 = pneg %p60
        %p457 = pneg %p57
        %p458 = pneg %p81
        %p459 = pneg %p78
        %p460 = pneg %p102
        %p461 = pneg %p99
        %s462 = sand.u32 %s27, 1
        %s463 = scalar_lea.sflag [#allocation10], %s462
        %s464 = sand.u32 %s115, 1
        %s465 = smul.addr %s464, 64
        %s466 = scalar_lea.vmem [#allocation9], %s465
        %p467 = pneg %p128
        %p468 = pneg %p125
        %p469 = scmp.lt.s32.totalorder %s32, 1
        %s470 = scalar_select %p469, %s32, 1
        %s471 = scalar_lea.vmem %s4, %s470
        %p472 = pneg %p154
        %p473 = pneg %p151
        %s474 = sand.u32 %s27, 1
        %s475 = scalar_lea.sflag [#allocation10], %s474
        %s476 = sand.u32 %s167, 1
        %s477 = smul.addr %s476, 64
        %s478 = scalar_lea.vmem [#allocation11], %s477
        %p479 = pneg %p180
        %p480 = pneg %p177
        %p481 = scmp.lt.s32.totalorder %s32, 1
        %s482 = scalar_select %p481, %s32, 1
        %s483 = scalar_lea.vmem %s6, %s482
        %p484 = pneg %p206
        %p485 = pneg %p203
        %p486 = pneg %p227
        %p487 = pneg %p224
        %p488 = pneg %p248
        %p489 = pneg %p245
        %p490 = pneg %p274
        %p491 = pneg %p271
        %s492 = smul.u32 2, %s31
        %p493 = scmp.lt.s32.totalorder %s32, 1
        %s494 = scalar_select %p493, %s32, 1
        %s495 = scalar_lea.vmem %s4, %s494
        %p496 = scmp.lt.s32.totalorder %s32, 1
        %s497 = scalar_select %p496, %s32, 1
        %s498 = scalar_lea.vmem %s6, %s497
        %s499 = smul.u32 2, %s31
        %p500 = scmp.eq.s32.totalorder %s32, 0
        // Predicated region
        $region81: #{tpu_custom_call.1} parent=55 // pred_check
          %p501 = pneg %p500
        $region82: #{tpu_custom_call.1} parent=55 // pred_check_branch
          %503 = sbr.rel (%p501) target = $region84
        $region83: #{tpu_custom_call.1} parent=55 // pred_region
          %v504 = vld [vmem:[#allocation3] sm:$0xf]
          %v505 = vld [vmem:[#allocation3 + $0x4] sm:$0xf]
          %v506 = vld [vmem:[#allocation6] sm:$0xf]
          %v507 = vld [vmem:[#allocation6 + $0x4] sm:$0xf]
          %v508 = vld [vmem:[#allocation6 + $0x8] sm:$0xf]
          %v509 = vld [vmem:[#allocation6 + $0xc] sm:$0xf]
          %v510 = vld [vmem:[#allocation6 + $0x10] sm:$0xf]
          %v511 = vld [vmem:[#allocation6 + $0x14] sm:$0xf]
          %v512 = vld [vmem:[#allocation6 + $0x18] sm:$0xf]
          %v513 = vld [vmem:[#allocation6 + $0x1c] sm:$0xf]
          %v514 = vld [vmem:[#allocation6 + $0x20] sm:$0xf]
          %v515 = vld [vmem:[#allocation6 + $0x24] sm:$0xf]
          %v516 = vld [vmem:[#allocation6 + $0x28] sm:$0xf]
          %v517 = vld [vmem:[#allocation6 + $0x2c] sm:$0xf]
          %v518 = vld [vmem:[#allocation6 + $0x30] sm:$0xf]
          %v519 = vld [vmem:[#allocation6 + $0x34] sm:$0xf]
          %v520 = vld [vmem:[#allocation6 + $0x38] sm:$0xf]
          %v521 = vld [vmem:[#allocation6 + $0x3c] sm:$0xf]
          %v522 = vld [vmem:[#allocation8] sm:$0x1]
          %v524 = vperm.slane %v522, 0
          %v528 = vunpack.c.l.b16 %v504
          %v529 = vunpack.c.l.b16 %v505
          %v530 = vpack.c.b16 %v529, %v528
          %v548 = vunpack.c.l.b16 %v506
          %v549 = vunpack.c.l.b16 %v507
          %v550 = vunpack.c.l.b16 %v508
          %v551 = vunpack.c.l.b16 %v509
          %v552 = vunpack.c.l.b16 %v510
          %v553 = vunpack.c.l.b16 %v511
          %v554 = vunpack.c.l.b16 %v512
          %v555 = vunpack.c.l.b16 %v513
          %v556 = vunpack.c.l.b16 %v514
          %v557 = vunpack.c.l.b16 %v515
          %v558 = vunpack.c.l.b16 %v516
          %v559 = vunpack.c.l.b16 %v517
          %v560 = vunpack.c.l.b16 %v518
          %v561 = vunpack.c.l.b16 %v519
          %v562 = vunpack.c.l.b16 %v520
          %v563 = vunpack.c.l.b16 %v521
          %v564 = vpack.c.b16 %v549, %v548
          %v565 = vpack.c.b16 %v551, %v550
          %v566 = vpack.c.b16 %v553, %v552
          %v567 = vpack.c.b16 %v555, %v554
          %v568 = vpack.c.b16 %v557, %v556
          %v569 = vpack.c.b16 %v559, %v558
          %v570 = vpack.c.b16 %v561, %v560
          %v571 = vpack.c.b16 %v563, %v562
          %580 = vmatpush.bf16.msra.mxu0 %v571
          %581 = vmatpush.bf16.msra.mxu0 %v570
          %582 = vmatpush.bf16.msra.mxu0 %v569
          %583 = vmatpush.bf16.msra.mxu0 %v568
          %584 = vmatpush.bf16.msra.mxu0 %v567
          %585 = vmatpush.bf16.msra.mxu0 %v566
          %586 = vmatpush.bf16.msra.mxu0 %v565
          %587 = vmatpush.bf16.msra.mxu0 %v564
          %588 = vmatmul.bf16.gmra.mxu0 %v530
          %v589 = vpop.f32.mrf.mxu0
          %v590 = vadd.f32 %v524, %v589
          %v591 = vpop.f32.mrf.mxu0
          %v592 = vadd.f32 %v524, %v591
          %593 = vdwg.mxu0
          %594 = vst [vmem:[#allocation2] sm:$0xff] %v590
          %595 = vst [vmem:[#allocation2 + $0x8] sm:$0xff] %v592
        $region84: #{tpu_custom_call.1} parent=55 // pred_fallthru
          _
        %v596 = vld [vmem:[#allocation2] sm:$0xff]
        %v597 = vld [vmem:[#allocation2 + $0x8] sm:$0xff]
        %v598 = vmax.f32 %v596, 0.0
        %v599 = vmax.f32 %v597, 0.0
        %v600 = vpack.c.bf16 %v599, %v598
        %v601 = vld [vmem:[%s435] sm:$0xf]
        %v602 = vld [vmem:[%s435 + $0x4] sm:$0xf]
        %v603 = vld [vmem:[%s435 + $0x8] sm:$0xf]
        %v604 = vld [vmem:[%s435 + $0xc] sm:$0xf]
        %v605 = vld [vmem:[%s435 + $0x10] sm:$0xf]
        %v606 = vld [vmem:[%s435 + $0x14] sm:$0xf]
        %v607 = vld [vmem:[%s435 + $0x18] sm:$0xf]
        %v608 = vld [vmem:[%s435 + $0x1c] sm:$0xf]
        %v609 = vld [vmem:[%s435 + $0x20] sm:$0xf]
        %v610 = vld [vmem:[%s435 + $0x24] sm:$0xf]
        %v611 = vld [vmem:[%s435 + $0x28] sm:$0xf]
        %v612 = vld [vmem:[%s435 + $0x2c] sm:$0xf]
        %v613 = vld [vmem:[%s435 + $0x30] sm:$0xf]
        %v614 = vld [vmem:[%s435 + $0x34] sm:$0xf]
        %v615 = vld [vmem:[%s435 + $0x38] sm:$0xf]
        %v616 = vld [vmem:[%s435 + $0x3c] sm:$0xf]
        %v617 = vld [vmem:[%s495] sm:$0x1]
        %v619 = vperm.slane %v617, 0
        %v637 = vunpack.c.l.b16 %v601
        %v638 = vunpack.c.l.b16 %v602
        %v639 = vunpack.c.l.b16 %v603
        %v640 = vunpack.c.l.b16 %v604
        %v641 = vunpack.c.l.b16 %v605
        %v642 = vunpack.c.l.b16 %v606
        %v643 = vunpack.c.l.b16 %v607
        %v644 = vunpack.c.l.b16 %v608
        %v645 = vunpack.c.l.b16 %v609
        %v646 = vunpack.c.l.b16 %v610
        %v647 = vunpack.c.l.b16 %v611
        %v648 = vunpack.c.l.b16 %v612
        %v649 = vunpack.c.l.b16 %v613
        %v650 = vunpack.c.l.b16 %v614
        %v651 = vunpack.c.l.b16 %v615
        %v652 = vunpack.c.l.b16 %v616
        %v653 = vpack.c.b16 %v638, %v637
        %v654 = vpack.c.b16 %v640, %v639
        %v655 = vpack.c.b16 %v642, %v641
        %v656 = vpack.c.b16 %v644, %v643
        %v657 = vpack.c.b16 %v646, %v645
        %v658 = vpack.c.b16 %v648, %v647
        %v659 = vpack.c.b16 %v650, %v649
        %v660 = vpack.c.b16 %v652, %v651
        %669 = vmatpush.bf16.msra.mxu0 %v660
        %670 = vmatpush.bf16.msra.mxu0 %v659
        %671 = vmatpush.bf16.msra.mxu0 %v658
        %672 = vmatpush.bf16.msra.mxu0 %v657
        %673 = vmatpush.bf16.msra.mxu0 %v656
        %674 = vmatpush.bf16.msra.mxu0 %v655
        %675 = vmatpush.bf16.msra.mxu0 %v654
        %676 = vmatpush.bf16.msra.mxu0 %v653
        %677 = vmatmul.bf16.gmra.mxu0 %v600
        %v678 = vpop.f32.mrf.mxu0
        %v679 = vadd.f32 %v619, %v678
        %v680 = vpop.f32.mrf.mxu0
        %v681 = vadd.f32 %v619, %v680
        %682 = vdwg.mxu0
        %v683 = vmax.f32 %v679, 0.0
        %v684 = vmax.f32 %v681, 0.0
        %v685 = vpack.c.bf16 %v684, %v683
        %v686 = vld [vmem:[%s445] sm:$0xf]
        %v687 = vld [vmem:[%s445 + $0x4] sm:$0xf]
        %v688 = vld [vmem:[%s445 + $0x8] sm:$0xf]
        %v689 = vld [vmem:[%s445 + $0xc] sm:$0xf]
        %v690 = vld [vmem:[%s445 + $0x10] sm:$0xf]
        %v691 = vld [vmem:[%s445 + $0x14] sm:$0xf]
        %v692 = vld [vmem:[%s445 + $0x18] sm:$0xf]
        %v693 = vld [vmem:[%s445 + $0x1c] sm:$0xf]
        %v694 = vld [vmem:[%s445 + $0x20] sm:$0xf]
        %v695 = vld [vmem:[%s445 + $0x24] sm:$0xf]
        %v696 = vld [vmem:[%s445 + $0x28] sm:$0xf]
        %v697 = vld [vmem:[%s445 + $0x2c] sm:$0xf]
        %v698 = vld [vmem:[%s445 + $0x30] sm:$0xf]
        %v699 = vld [vmem:[%s445 + $0x34] sm:$0xf]
        %v700 = vld [vmem:[%s445 + $0x38] sm:$0xf]
        %v701 = vld [vmem:[%s445 + $0x3c] sm:$0xf]
        %v702 = vld [vmem:[%s498] sm:$0x1]
        %v704 = vperm.slane %v702, 0
        %v722 = vunpack.c.l.b16 %v686
        %v723 = vunpack.c.l.b16 %v687
        %v724 = vunpack.c.l.b16 %v688
        %v725 = vunpack.c.l.b16 %v689
        %v726 = vunpack.c.l.b16 %v690
        %v727 = vunpack.c.l.b16 %v691
        %v728 = vunpack.c.l.b16 %v692
        %v729 = vunpack.c.l.b16 %v693
        %v730 = vunpack.c.l.b16 %v694
        %v731 = vunpack.c.l.b16 %v695
        %v732 = vunpack.c.l.b16 %v696
        %v733 = vunpack.c.l.b16 %v697
        %v734 = vunpack.c.l.b16 %v698
        %v735 = vunpack.c.l.b16 %v699
        %v736 = vunpack.c.l.b16 %v700
        %v737 = vunpack.c.l.b16 %v701
        %v738 = vpack.c.b16 %v723, %v722
        %v739 = vpack.c.b16 %v725, %v724
        %v740 = vpack.c.b16 %v727, %v726
        %v741 = vpack.c.b16 %v729, %v728
        %v742 = vpack.c.b16 %v731, %v730
        %v743 = vpack.c.b16 %v733, %v732
        %v744 = vpack.c.b16 %v735, %v734
        %v745 = vpack.c.b16 %v737, %v736
        %754 = vmatpush.bf16.msra.mxu0 %v745
        %755 = vmatpush.bf16.msra.mxu0 %v744
        %756 = vmatpush.bf16.msra.mxu0 %v743
        %757 = vmatpush.bf16.msra.mxu0 %v742
        %758 = vmatpush.bf16.msra.mxu0 %v741
        %759 = vmatpush.bf16.msra.mxu0 %v740
        %760 = vmatpush.bf16.msra.mxu0 %v739
        %761 = vmatpush.bf16.msra.mxu0 %v738
        %762 = vmatmul.bf16.gmra.mxu0 %v685
        %v763 = vpop.f32.mrf.mxu0
        %v764 = vadd.f32 %v704, %v763
        %v765 = vpop.f32.mrf.mxu0
        %v766 = vadd.f32 %v704, %v765
        %767 = vdwg.mxu0
        %v768 = vadd.f32 %v596, %v764
        %v769 = vadd.f32 %v597, %v766
        %770 = vst [vmem:[#allocation2] sm:$0xff] %v768
        %771 = vst [vmem:[#allocation2 + $0x8] sm:$0xff] %v769
        %p772 = scmp.eq.s32.totalorder %s32, 1
        // Predicated region
        $region85: #{tpu_custom_call.1} parent=55 // pred_check
          %p773 = pneg %p772
        $region86: #{tpu_custom_call.1} parent=55 // pred_check_branch
          %775 = sbr.rel (%p773) target = $region88
        $region87: #{tpu_custom_call.1} parent=55 // pred_region
          %v776 = vpack.c.bf16 %v769, %v768
          %v777 = vld [vmem:[#allocation12] sm:$0xf]
          %v778 = vld [vmem:[#allocation12 + $0x4] sm:$0xf]
          %v779 = vld [vmem:[#allocation12 + $0x8] sm:$0xf]
          %v780 = vld [vmem:[#allocation12 + $0xc] sm:$0xf]
          %v781 = vld [vmem:[#allocation12 + $0x10] sm:$0xf]
          %v782 = vld [vmem:[#allocation12 + $0x14] sm:$0xf]
          %v783 = vld [vmem:[#allocation12 + $0x18] sm:$0xf]
          %v784 = vld [vmem:[#allocation12 + $0x1c] sm:$0xf]
          %v785 = vld [vmem:[#allocation12 + $0x20] sm:$0xf]
          %v786 = vld [vmem:[#allocation12 + $0x24] sm:$0xf]
          %v787 = vld [vmem:[#allocation12 + $0x28] sm:$0xf]
          %v788 = vld [vmem:[#allocation12 + $0x2c] sm:$0xf]
          %v789 = vld [vmem:[#allocation12 + $0x30] sm:$0xf]
          %v790 = vld [vmem:[#allocation12 + $0x34] sm:$0xf]
          %v791 = vld [vmem:[#allocation12 + $0x38] sm:$0xf]
          %v792 = vld [vmem:[#allocation12 + $0x3c] sm:$0xf]
          %v793 = vld [vmem:[%s8] sm:$0x1]
          %v795 = vperm.slane %v793, 0
          %v813 = vunpack.c.l.b16 %v777
          %v814 = vunpack.c.l.b16 %v778
          %v815 = vunpack.c.l.b16 %v779
          %v816 = vunpack.c.l.b16 %v780
          %v817 = vunpack.c.l.b16 %v781
          %v818 = vunpack.c.l.b16 %v782
          %v819 = vunpack.c.l.b16 %v783
          %v820 = vunpack.c.l.b16 %v784
          %v821 = vunpack.c.l.b16 %v785
          %v822 = vunpack.c.l.b16 %v786
          %v823 = vunpack.c.l.b16 %v787
          %v824 = vunpack.c.l.b16 %v788
          %v825 = vunpack.c.l.b16 %v789
          %v826 = vunpack.c.l.b16 %v790
          %v827 = vunpack.c.l.b16 %v791
          %v828 = vunpack.c.l.b16 %v792
          %v829 = vpack.c.b16 %v814, %v813
          %v830 = vpack.c.b16 %v816, %v815
          %v831 = vpack.c.b16 %v818, %v817
          %v832 = vpack.c.b16 %v820, %v819
          %v833 = vpack.c.b16 %v822, %v821
          %v834 = vpack.c.b16 %v824, %v823
          %v835 = vpack.c.b16 %v826, %v825
          %v836 = vpack.c.b16 %v828, %v827
          %845 = vmatpush.bf16.msra.mxu0 %v836
          %846 = vmatpush.bf16.msra.mxu0 %v835
          %847 = vmatpush.bf16.msra.mxu0 %v834
          %848 = vmatpush.bf16.msra.mxu0 %v833
          %849 = vmatpush.bf16.msra.mxu0 %v832
          %850 = vmatpush.bf16.msra.mxu0 %v831
          %851 = vmatpush.bf16.msra.mxu0 %v830
          %852 = vmatpush.bf16.msra.mxu0 %v829
          %853 = vmatmul.bf16.gmra.mxu0 %v776
          %v854 = vpop.f32.mrf.mxu0
          %v855 = vadd.f32 %v795, %v854
          %v856 = vpop.f32.mrf.mxu0
          %v857 = vadd.f32 %v795, %v856
          %858 = vdwg.mxu0
          %859 = vst [vmem:[#allocation14] sm:$0xff] %v855
          %860 = vst [vmem:[#allocation14 + $0x8] sm:$0xff] %v857
        $region88: #{tpu_custom_call.1} parent=55 // pred_fallthru
          _
        // Predicated region
        $region89: #{tpu_custom_call.1} parent=55 // pred_check
          %p861 = pneg %p271
        $region90: #{tpu_custom_call.1} parent=55 // pred_check_branch
          %863 = sbr.rel (%p861) target = $region92
        $region91: #{tpu_custom_call.1} parent=55 // pred_region
          %s864 = smul.u32 2, %s31
          %866 = vsyncadd [#allocation5], 0
          %s867 = smul.addr %s864, 8
          %s868 = scalar_lea.hbm %s9, %s867
          %s869 = sshll.u32 [#allocation14], 4
          %s870 = int_to_ptr.vmem [resolvable:$true] %s869
          %s871 = sshll.u32 %s868, 4
          %s872 = int_to_ptr.hbm [resolvable:$true] %s871
          %877 = dma.vmem_to_hbm [thread:$0]  %s870, 256, %s872, [#allocation5], 128, 128, 8
        $region92: #{tpu_custom_call.1} parent=55 // pred_fallthru
          _
        // Predicated region
        $region93: #{tpu_custom_call.1} parent=55 // pred_check
          %p878 = pneg %p271
        $region94: #{tpu_custom_call.1} parent=55 // pred_check_branch
          %880 = sbr.rel (%p878) target = $region96
        $region95: #{tpu_custom_call.1} parent=55 // pred_region
          %882 = dma.done [#allocation5], 256
        $region96: #{tpu_custom_call.1} parent=55 // pred_fallthru
          _
      $region56: #{tpu_custom_call.1} parent=5 // pred_fallthru
        _
      %p883 = scmp.le.s32.totalorder 2, %s22
      // Predicated region
      $region97: #{tpu_custom_call.1} parent=5 // pred_check
        %p884 = pneg %p883
      $region98: #{tpu_custom_call.1} parent=5 // pred_check_branch
        %886 = sbr.rel (%p884) target = $region100
      $region99: #{tpu_custom_call.1} parent=5 // pred_region
        %s887 = ssub.s32 %s22, 2
      $region100: #{tpu_custom_call.1} parent=5 // pred_fallthru
        _
    $region6: #{tpu_custom_call.1} parent=1 // loop_footer
      %s26 = sadd.s32 1, %s22
    $region7: #{tpu_custom_call.1} parent=1 // loop_footer_branch
      %21 = sbr.rel target = $region3
    $region8: #{tpu_custom_call.1} parent=1 // loop_exit
      _
    %888 = vsyncpa [#allocation4], 1
    %s889 = scalar_lea.sflag [#allocation4], 1
    %890 = vsyncpa %s889, 1
    %891 = vsyncpa [#allocation7], 1
    %892 = vsyncpa [#allocation10], 1
    %s893 = scalar_lea.sflag [#allocation10], 1
    %894 = vsyncpa %s893, 1
    %895 = vsyncpa [#allocation13], 1
    %896 = vsyncpa [#allocation5], 1
    %s897 = scalar_lea.sflag [#allocation5], 1
    %898 = vsyncpa %s897, 1

</llo_original>
